<compile_context>
chip_gen: v7x
topology: tpu7x:2x2x1
jax: 0.10.0
libtpu: 0.0.40
codegen_flags: <defaults>
</compile_context>

<pallas_src>
import functools

import jax
import jax.numpy as jnp
from jax.experimental import pallas as pl
from jax.experimental.pallas import tpu as pltpu

LANES = 128
DEFAULT_BLOCK_ROWS = 2048   # 2048 x 128 x 4B = 1 MiB per f32 input block


def _default_num_shards():
    # The leading "parallel" axis only pays off on chips where a single Pallas
    # kernel spans two TensorCores (v4/v5p megacore, v7x dual-TC).  On
    # single-TC chips (v5e/v6e) use 1 shard: no clamped duplicate block, no
    # dead axis.
    try:
        kind = jax.devices()[0].device_kind.lower()
    except Exception:
        return 1
    if any(tag in kind for tag in ("v4", "v5p", "v7")):
        return 2
    return 1


def _msle_kernel(p_ref, a_ref, o_ref, *, rows_total, block_rows,
                 blocks_per_shard, has_partial, has_oob):
    s = pl.program_id(0)   # shard across TensorCores ("parallel")
    i = pl.program_id(1)   # streaming block within the shard ("arbitrary")

    @pl.when(i == 0)
    def _init():
        o_ref[...] = jnp.zeros_like(o_ref)

    def fold(sq):
        # (block_rows, 128) -> (8, 128): pure vreg adds on the VPU; the final
        # cross-sublane/lane reduce happens on the tiny partials in the wrapper.
        o_ref[...] += sq.reshape(block_rows // 8, 8, LANES).sum(axis=0)

    def fast_body():
        p = p_ref[...].astype(jnp.float32)
        a = a_ref[...].astype(jnp.float32)
        d = jnp.log((p + 1.0) / (a + 1.0))   # one log instead of two
        fold(d * d)

    if not (has_partial or has_oob):
        # Statically known: every block is fully in range -> no masking code.
        fast_body()
    else:
        row0 = (s * blocks_per_shard + i) * block_rows

        @pl.when(row0 + block_rows <= rows_total)
        def _fast():
            fast_body()

        @pl.when(jnp.logical_and(row0 < rows_total,
                                 row0 + block_rows > rows_total))
        def _masked():
            # Mask BEFORE the log so garbage rows in the ragged last block
            # never reach a transcendental; zeros are exactly neutral
            # (log((0+1)/(0+1)) = 0).
            row_ids = row0 + jax.lax.broadcasted_iota(
                jnp.int32, (block_rows, LANES), 0)
            valid = row_ids < rows_total
            p = jnp.where(valid, p_ref[...].astype(jnp.float32), 0.0)
            a = jnp.where(valid, a_ref[...].astype(jnp.float32), 0.0)
            d = jnp.log((p + 1.0) / (a + 1.0))
            fold(d * d)
        # Blocks with row0 >= rows_total (clamped duplicates) skip all compute.


def msle_loss(pred, actual, *, block_rows=DEFAULT_BLOCK_ROWS, num_shards=None):
    assert pred.shape == actual.shape, "pred/actual must have the same shape"
    n = int(pred.size)
    assert n > 0

    p = pred.reshape(-1)
    a = actual.reshape(-1)

    align = 8 * LANES                    # 1024 elements
    n_main = (n // align) * align        # kernel handles this aligned prefix
    n_tail = n - n_main                  # < 1024 elements -> plain jnp below

    total = jnp.zeros((), jnp.float32)

    if n_main > 0:
        rows = n_main // LANES           # multiple of 8
        if n_tail == 0:
            p_main, a_main = p, a        # zero-copy: contiguous reshape only
        else:
            # TODO(synk): replace this prefix slice (one HBM copy per input)
            # with a manual-DMA pl.ANY path for fully zero-copy ragged sizes.
            p_main = jax.lax.slice(p, (0,), (n_main,))
            a_main = jax.lax.slice(a, (0,), (n_main,))
        p2 = p_main.reshape(rows, LANES)
        a2 = a_main.reshape(rows, LANES)

        # block_rows stays a multiple of 8 (rows is), never taller than rows.
        block_rows = max(8, min(block_rows, rows))
        n_blocks = pl.cdiv(rows, block_rows)

        if num_shards is None:
            num_shards = _default_num_shards()
        num_shards = max(1, min(num_shards, n_blocks))
        blocks_per_shard = pl.cdiv(n_blocks, num_shards)

        def in_index_map(s, i):
            b = s * blocks_per_shard + i
            # Clamp so no DMA goes out of bounds; clamped duplicate blocks are
            # skipped (no compute) inside the kernel.
            return (jnp.minimum(b, n_blocks - 1), 0)

        kernel = functools.partial(
            _msle_kernel,
            rows_total=rows,
            block_rows=block_rows,
            blocks_per_shard=blocks_per_shard,
            has_partial=(rows % block_rows) != 0,
            has_oob=(blocks_per_shard * num_shards) != n_blocks,
        )

        partials = pl.pallas_call(
            kernel,
            out_shape=jax.ShapeDtypeStruct((num_shards * 8, LANES), jnp.float32),
            grid_spec=pltpu.PrefetchScalarGridSpec(
                num_scalar_prefetch=0,
                grid=(num_shards, blocks_per_shard),
                in_specs=[
                    pl.BlockSpec((block_rows, LANES), in_index_map),
                    pl.BlockSpec((block_rows, LANES), in_index_map),
                ],
                out_specs=pl.BlockSpec((8, LANES), lambda s, i: (s, 0)),
            ),
            compiler_params=pltpu.CompilerParams(
                dimension_semantics=("parallel", "arbitrary"),
                vmem_limit_bytes=32 * 1024 * 1024,
            ),
        )(p2, a2)
        total = total + partials.sum()

    if n_tail > 0:
        pt = jax.lax.slice(p, (n_main,), (n,)).astype(jnp.float32)
        at = jax.lax.slice(a, (n_main,), (n,)).astype(jnp.float32)
        dt = jnp.log((pt + 1.0) / (at + 1.0))
        total = total + jnp.sum(dt * dt)

    return total / n


if __name__ == "__main__":
    key = jax.random.PRNGKey(0)
    k1, k2, k3, k4 = jax.random.split(key, 4)

    # Primary small example (NCHW-style predictions/targets); values kept > 0
    # so log(x + 1) is well-defined, matching typical MSLE usage.
    shape = (2, 4, 16, 16)
    pred = jax.random.uniform(k1, shape, dtype=jnp.float32, minval=0.0, maxval=5.0)
    actual = jax.random.uniform(k2, shape, dtype=jnp.float32, minval=0.0, maxval=5.0)

    loss = msle_loss(pred, actual)
    jax.block_until_ready(loss)
    ref = jnp.mean((jnp.log(pred + 1.0) - jnp.log(actual + 1.0)) ** 2)
    assert jnp.allclose(loss, ref, rtol=1e-5, atol=1e-6), (loss, ref)

    # Secondary check: ragged size (not a multiple of 8*128) spanning multiple
    # streaming blocks -> exercises fast path, masked last block, and the
    # wrapper-side tail.
    shape2 = (6, 7, 81, 81)
    pred2 = jax.random.uniform(k3, shape2, dtype=jnp.float32, minval=0.0, maxval=5.0)
    actual2 = jax.random.uniform(k4, shape2, dtype=jnp.float32, minval=0.0, maxval=5.0)
    loss2 = msle_loss(pred2, actual2)
    jax.block_until_ready(loss2)
    ref2 = jnp.mean((jnp.log(pred2 + 1.0) - jnp.log(actual2 + 1.0)) ** 2)
    assert jnp.allclose(loss2, ref2, rtol=1e-5, atol=1e-6), (loss2, ref2)

    print("KERNEL_OK")
</pallas_src>

<mosaic_0001>
module attributes {stable_mosaic.version = 11 : i64} {
  func.func @_msle_kernel(%arg0: i32, %arg1: i32, %arg2: memref<16x128xf32, #tpu.memory_space<vmem>>, %arg3: memref<16x128xf32, #tpu.memory_space<vmem>>, %arg4: memref<8x128xf32, #tpu.memory_space<vmem>>) attributes {dimension_semantics = [#tpu.dimension_semantics<parallel>, #tpu.dimension_semantics<arbitrary>], iteration_bounds = array<i64: 1, 1>, scalar_prefetch = 0 : i64, scratch_operands = 0 : i64, tpu.core_type = #tpu.core_type<tc>, window_params = [{transform_indices = @transform_0, window_bounds = array<i64: 16, 128>}, {transform_indices = @transform_1, window_bounds = array<i64: 16, 128>}, {transform_indices = @transform_2, window_bounds = array<i64: 8, 128>}]} {
    %c0_i32 = arith.constant 0 : i32
    %0 = arith.cmpi eq, %arg1, %c0_i32 : i32
    %1 = arith.extui %0 : i1 to i32
    %c0_i32_0 = arith.constant 0 : i32
    %2 = arith.cmpi ne, %1, %c0_i32_0 : i32
    scf.if %2 {
      %cst_10 = arith.constant 0.000000e+00 : f32
      %17 = vector.broadcast %cst_10 : f32 to vector<8x128xf32>
      %c0_11 = arith.constant 0 : index
      %c0_12 = arith.constant 0 : index
      %18 = vector.load %arg4[%c0_11, %c0_12] : memref<8x128xf32, #tpu.memory_space<vmem>>, vector<8x128xf32>
      tpu.vector_store %arg4[%c0_11, %c0_12], %17 {strides = array<i32>} : memref<8x128xf32, #tpu.memory_space<vmem>>, vector<8x128xf32>,
    } else {
    }
    %c0 = arith.constant 0 : index
    %c0_1 = arith.constant 0 : index
    %3 = vector.load %arg2[%c0, %c0_1] : memref<16x128xf32, #tpu.memory_space<vmem>>, vector<16x128xf32>
    %c0_2 = arith.constant 0 : index
    %c0_3 = arith.constant 0 : index
    %4 = vector.load %arg3[%c0_2, %c0_3] : memref<16x128xf32, #tpu.memory_space<vmem>>, vector<16x128xf32>
    %cst = arith.constant 1.000000e+00 : f32
    %5 = vector.broadcast %cst : f32 to vector<16x128xf32>
    %6 = arith.addf %3, %5 : vector<16x128xf32>
    %cst_4 = arith.constant 1.000000e+00 : f32
    %7 = vector.broadcast %cst_4 : f32 to vector<16x128xf32>
    %8 = arith.addf %4, %7 : vector<16x128xf32>
    %9 = arith.divf %6, %8 : vector<16x128xf32>
    %10 = math.log %9 : vector<16x128xf32>
    %11 = arith.mulf %10, %10 : vector<16x128xf32>
    %c0_5 = arith.constant 0 : index
    %c0_6 = arith.constant 0 : index
    %12 = vector.load %arg4[%c0_5, %c0_6] : memref<8x128xf32, #tpu.memory_space<vmem>>, vector<8x128xf32>
    %13 = vector.shape_cast %11 : vector<16x128xf32> to vector<2x8x128xf32>
    %cst_7 = arith.constant dense<0.000000e+00> : vector<8x128xf32>
    %14 = vector.multi_reduction <add>, %13, %cst_7 [0] : vector<2x8x128xf32> to vector<8x128xf32>
    %15 = arith.addf %12, %14 : vector<8x128xf32>
    %c0_8 = arith.constant 0 : index
    %c0_9 = arith.constant 0 : index
    %16 = vector.load %arg4[%c0_8, %c0_9] : memref<8x128xf32, #tpu.memory_space<vmem>>, vector<8x128xf32>
    tpu.vector_store %arg4[%c0_8, %c0_9], %15 {strides = array<i32>} : memref<8x128xf32, #tpu.memory_space<vmem>>, vector<8x128xf32>,
    return
  }
  func.func @transform_0(%arg0: i32, %arg1: i32) -> (i32, i32) {
    %c1_i32 = arith.constant 1 : i32
    %0 = arith.muli %arg0, %c1_i32 : i32
    %1 = arith.addi %0, %arg1 : i32
    %c0_i32 = arith.constant 0 : i32
    %2 = arith.minsi %1, %c0_i32 : i32
    %c0_i32_0 = arith.constant 0 : i32
    %c0_i32_1 = arith.constant 0 : i32
    return %2, %c0_i32_0 : i32, i32
  }
  func.func @transform_1(%arg0: i32, %arg1: i32) -> (i32, i32) {
    %c1_i32 = arith.constant 1 : i32
    %0 = arith.muli %arg0, %c1_i32 : i32
    %1 = arith.addi %0, %arg1 : i32
    %c0_i32 = arith.constant 0 : i32
    %2 = arith.minsi %1, %c0_i32 : i32
    %c0_i32_0 = arith.constant 0 : i32
    %c0_i32_1 = arith.constant 0 : i32
    return %2, %c0_i32_0 : i32, i32
  }
  func.func @transform_2(%arg0: i32, %arg1: i32) -> (i32, i32) {
    %c0_i32 = arith.constant 0 : i32
    %c0_i32_0 = arith.constant 0 : i32
    return %arg0, %c0_i32 : i32, i32
  }
}

</mosaic_0001>

<llo_original>
// kernel: tpu_custom_call.1
$region0: #{tpu_custom_call.1}
  #allocation0 [shape = 'u32[]', space=smem, size = 0x4, offset = 0x4, fixed_abs, tag = 'smem constant byte address 0x4 - core index']
  #allocation1 [shape = 'u32[144,128]{1,0:T(1,128)}', space=vmem, size = 0x12000, scoped, tag = 'internal scratch']
  %s0 = inlined_call_operand.hbm [shape: f32[16,128], index: 0, kind: input, shape index: {}]
  %s1 = inlined_call_operand.hbm [shape: f32[16,128], index: 1, kind: input, shape index: {}]
  %s2 = inlined_call_operand.hbm [shape: f32[8,128], index: 2, kind: output, shape index: {}]
  %s3 = sld [smem:[#allocation0]]
  $region30: #{tpu_custom_call.1} parent=0
    _
  %s5 = ssub.s32 1, %s3
  %s6 = scalar_select 0, %s5, %s3
  $region1: #{tpu_custom_call.1} parent=0
    #allocation2 [shape = 'u8[8192]{0}', space=vmem, size = 0x2000, scoped, tag = 'input window, operand 0, single buffered']
    #allocation3 [shape = 's32[1]{0}', space=sflag, size = 0x4, scoped, tag = 'scoped memory for tpu_custom_call.1']
    #allocation4 [shape = 's32[1]{0}', space=sflag, size = 0x4, scoped, tag = 'scoped memory for tpu_custom_call.1']
    #allocation5 [shape = 'u8[8192]{0}', space=vmem, size = 0x2000, scoped, tag = 'input window, operand 1, single buffered']
    #allocation6 [shape = 's32[1]{0}', space=sflag, size = 0x4, scoped, tag = 'scoped memory for tpu_custom_call.1']
    #allocation7 [shape = 'u8[4096]{0}', space=vmem, size = 0x1000, scoped, tag = 'output window, operand 0, single buffered']
    %7 = vsyncpa [#allocation3], 0
    %8 = vsyncpa [#allocation6], 0
    %9 = vsyncpa [#allocation4], 0
    // Predicated region
    $region2: #{tpu_custom_call.1} parent=1 // pred_check
      _
    $region3: #{tpu_custom_call.1} parent=1 // pred_check_branch
      %11 = sbr.rel (0) target = $region5
    $region4: #{tpu_custom_call.1} parent=1 // pred_region
      %s12 = sadd.s32 0, 0
      %p13 = scmp.lt.s32.totalorder %s12, 0
      %s14 = scalar_select %p13, %s12, 0
      %s15 = smul.u32 2, %s14
      %s17 = ssub.s32 256, 256
      %18 = vsyncadd [#allocation3], %s17
      %s19 = smul.addr %s15, 128
      %s20 = scalar_lea.hbm %s0, %s19
      %s21 = sshll.u32 [#allocation2], 4
      %s22 = int_to_ptr.vmem [resolvable:$true] %s21
      %27 = dma.hbm_to_vmem [thread:$0]  %s20, 256, %s22, [#allocation3], 128, 128, 8
    $region5: #{tpu_custom_call.1} parent=1 // pred_fallthru
      _
    // Predicated region
    $region6: #{tpu_custom_call.1} parent=1 // pred_check
      _
    $region7: #{tpu_custom_call.1} parent=1 // pred_check_branch
      %29 = sbr.rel (0) target = $region9
    $region8: #{tpu_custom_call.1} parent=1 // pred_region
      %s30 = sadd.s32 0, 0
      %p31 = scmp.lt.s32.totalorder %s30, 0
      %s32 = scalar_select %p31, %s30, 0
      %s33 = smul.u32 2, %s32
      %s35 = ssub.s32 256, 256
      %36 = vsyncadd [#allocation6], %s35
      %s37 = smul.addr %s33, 128
      %s38 = scalar_lea.hbm %s1, %s37
      %s39 = sshll.u32 [#allocation5], 4
      %s40 = int_to_ptr.vmem [resolvable:$true] %s39
      %45 = dma.hbm_to_vmem [thread:$0]  %s38, 256, %s40, [#allocation6], 128, 128, 8
    $region9: #{tpu_custom_call.1} parent=1 // pred_fallthru
      _
    // Predicated region
    $region10: #{tpu_custom_call.1} parent=1 // pred_check
      _
    $region11: #{tpu_custom_call.1} parent=1 // pred_check_branch
      %47 = sbr.rel (0) target = $region13
    $region12: #{tpu_custom_call.1} parent=1 // pred_region
      %48 = dma.done [#allocation3], 256
    $region13: #{tpu_custom_call.1} parent=1 // pred_fallthru
      _
    // Predicated region
    $region14: #{tpu_custom_call.1} parent=1 // pred_check
      _
    $region15: #{tpu_custom_call.1} parent=1 // pred_check_branch
      %50 = sbr.rel (0) target = $region17
    $region16: #{tpu_custom_call.1} parent=1 // pred_region
      %51 = dma.done [#allocation6], 256
    $region17: #{tpu_custom_call.1} parent=1 // pred_fallthru
      _
    %s52 = sadd.s32 0, 0
    %p53 = scmp.lt.s32.totalorder %s52, 0
    %s54 = scalar_select %p53, %s52, 0
    %s55 = smul.u32 2, %s54
    %s56 = sadd.s32 0, 0
    %p57 = scmp.lt.s32.totalorder %s56, 0
    %s58 = scalar_select %p57, %s56, 0
    %s59 = smul.u32 2, %s58
    %p60 = scmp.eq.s32.totalorder 0, 0
    // Predicated region
    $region18: #{tpu_custom_call.1} parent=1 // pred_check
      %p61 = pneg %p60
    $region19: #{tpu_custom_call.1} parent=1 // pred_check_branch
      %63 = sbr.rel (%p61) target = $region21
    $region20: #{tpu_custom_call.1} parent=1 // pred_region
      %64 = vst [vmem:[#allocation7] sm:$0xff] 0.0
    $region21: #{tpu_custom_call.1} parent=1 // pred_fallthru
      _
    %v65 = vld [vmem:[#allocation2] sm:$0xff]
    %v66 = vld [vmem:[#allocation2 + $0x8] sm:$0xff]
    %v67 = vld [vmem:[#allocation5] sm:$0xff]
    %v68 = vld [vmem:[#allocation5 + $0x8] sm:$0xff]
    %v69 = vadd.f32 %v65, 1.0
    %v70 = vadd.f32 %v66, 1.0
    %v71 = vadd.f32 %v67, 1.0
    %v72 = vadd.f32 %v68, 1.0
    %v73 = vrcp.pop %v71
    %v74 = vmul.f32 %v69, %v73
    %v75 = vrcp.pop %v72
    %v76 = vmul.f32 %v70, %v75
    %v77 = vlog2.pop %v74
    %v78 = vmul.f32 %v77, 0.6931472
    %v79 = vlog2.pop %v76
    %v80 = vmul.f32 %v79, 0.6931472
    %v81 = vmul.f32 %v78, %v78
    %v82 = vmul.f32 %v80, %v80
    %v83 = vld [vmem:[#allocation7] sm:$0xff]
    %v84 = vadd.f32 %v81, %v82
    %v85 = vadd.f32 %v83, %v84
    %86 = vst [vmem:[#allocation7] sm:$0xff] %v85
    // Predicated region
    $region22: #{tpu_custom_call.1} parent=1 // pred_check
      _
    $region23: #{tpu_custom_call.1} parent=1 // pred_check_branch
      %88 = sbr.rel (0) target = $region25
    $region24: #{tpu_custom_call.1} parent=1 // pred_region
      %s90 = ssub.s32 128, 128
      %91 = vsyncadd [#allocation4], %s90
      %s93 = sshll.u32 [#allocation7], 4
      %s94 = int_to_ptr.vmem [resolvable:$true] %s93
      %96 = dma.vmem_to_hbm [thread:$0]  %s94, 128, %s2, [#allocation4]
    $region25: #{tpu_custom_call.1} parent=1 // pred_fallthru
      _
    // Predicated region
    $region26: #{tpu_custom_call.1} parent=1 // pred_check
      _
    $region27: #{tpu_custom_call.1} parent=1 // pred_check_branch
      %98 = sbr.rel (0) target = $region29
    $region28: #{tpu_custom_call.1} parent=1 // pred_region
      %99 = dma.done [#allocation4], 128
    $region29: #{tpu_custom_call.1} parent=1 // pred_fallthru
      _
    %100 = vsyncpa [#allocation3], 1
    %101 = vsyncpa [#allocation6], 1
    %102 = vsyncpa [#allocation4], 1

</llo_original>
